<compile_context>
chip_gen: v7x
topology: tpu7x:2x2x1
jax: 0.10.0
libtpu: 0.0.40
codegen_flags: <defaults>
</compile_context>

<pallas_src>
import functools
import math

import jax
import jax.numpy as jnp
from jax.experimental import pallas as pl
from jax.experimental.pallas import tpu as pltpu


_NEG_INF = -1.0e30  # large finite negative: avoids inf-inf -> NaN in online softmax


# ----------------------------------------------------------------------------
# Tile-size helpers (respect the (8, 128) block constraints)
# ----------------------------------------------------------------------------
def _pick_tile_sublane(dim, preferred):
    """Tile for a second-minor dim: multiple of 8, or the full dim."""
    if dim <= preferred:
        return dim
    for cand in (preferred, 512, 256, 128, 64, 32, 16, 8):
        if cand <= preferred and dim % cand == 0:
            return cand
    return dim


def _pick_tile_lane(dim, preferred):
    """Tile for a minormost dim: multiple of 128, or the full dim."""
    if dim <= preferred or dim % 128 != 0:
        return dim
    for cand in (preferred, 1024, 512, 256, 128):
        if cand <= preferred and dim % cand == 0:
            return cand
    return dim


# ----------------------------------------------------------------------------
# Tiled linear projection kernel
# ----------------------------------------------------------------------------
def _matmul_kernel(x_ref, w_ref, o_ref, acc_ref):
    @pl.when(pl.program_id(2) == 0)
    def _():
        acc_ref[...] = jnp.zeros_like(acc_ref)

    acc_ref[...] += jnp.dot(
        x_ref[...], w_ref[...], preferred_element_type=jnp.float32
    )

    @pl.when(pl.program_id(2) == pl.num_programs(2) - 1)
    def _():
        o_ref[...] = acc_ref[...].astype(o_ref.dtype)


def pallas_linear(x2d, w, *, block_m=None, block_n=None, block_k=None):
    """y = x2d @ w with x2d: (M, K), w: (K, N). Tiled + pipelined on TPU."""
    M, K = x2d.shape
    K2, N = w.shape
    assert K == K2
    bm = block_m if block_m is not None else _pick_tile_sublane(M, 256)
    bn = block_n if block_n is not None else _pick_tile_lane(N, 256)
    bk = block_k if block_k is not None else _pick_tile_lane(K, 512)
    assert M % bm == 0 and N % bn == 0 and K % bk == 0

    return pl.pallas_call(
        _matmul_kernel,
        out_shape=jax.ShapeDtypeStruct((M, N), x2d.dtype),
        grid=(M // bm, N // bn, K // bk),
        in_specs=[
            pl.BlockSpec((bm, bk), lambda i, j, kk: (i, kk)),
            pl.BlockSpec((bk, bn), lambda i, j, kk: (kk, j)),
        ],
        out_specs=pl.BlockSpec((bm, bn), lambda i, j, kk: (i, j)),
        scratch_shapes=[pltpu.VMEM((bm, bn), jnp.float32)],
        compiler_params=pltpu.CompilerParams(
            dimension_semantics=("parallel", "parallel", "arbitrary")
        ),
    )(x2d, w)


# ----------------------------------------------------------------------------
# Flash-style causal attention kernel (online softmax, GQA via index_map)
# ----------------------------------------------------------------------------
def _flash_attn_kernel(q_ref, k_ref, v_ref, o_ref, m_ref, l_ref, acc_ref,
                       *, scale, block_q, block_k):
    qi = pl.program_id(2)
    ki = pl.program_id(3)
    q_start = qi * block_q
    k_start = ki * block_k

    @pl.when(ki == 0)
    def _():
        m_ref[...] = jnp.full_like(m_ref, _NEG_INF)
        l_ref[...] = jnp.zeros_like(l_ref)
        acc_ref[...] = jnp.zeros_like(acc_ref)

    # Skip KV blocks that lie entirely above the causal diagonal (~2x fewer
    # MXU FLOPs); their DMA is also elided by the clamped kv index_map.
    @pl.when(k_start <= q_start + block_q - 1)
    def _():
        q = q_ref[0, 0]  # (tq, D)
        k = k_ref[0, 0]  # (tk, D)
        v = v_ref[0, 0]  # (tk, D)

        # QK^T with an explicit contraction (no materialized transpose).
        s = jax.lax.dot_general(
            q, k, (((1,), (1,)), ((), ())),
            preferred_element_type=jnp.float32,
        ) * scale                                            # (tq, tk)

        q_ids = q_start + jax.lax.broadcasted_iota(jnp.int32, s.shape, 0)
        k_ids = k_start + jax.lax.broadcasted_iota(jnp.int32, s.shape, 1)
        s = jnp.where(k_ids <= q_ids, s, _NEG_INF)

        m_prev = m_ref[...]
        m_new = jnp.maximum(m_prev, jnp.max(s, axis=-1, keepdims=True))
        alpha = jnp.exp(m_prev - m_new)
        p = jnp.exp(s - m_new)
        l_ref[...] = alpha * l_ref[...] + jnp.sum(p, axis=-1, keepdims=True)
        acc_ref[...] = alpha * acc_ref[...] + jax.lax.dot_general(
            p.astype(v.dtype), v, (((1,), (0,)), ((), ())),
            preferred_element_type=jnp.float32,
        )
        m_ref[...] = m_new

    @pl.when(ki == pl.num_programs(3) - 1)
    def _():
        l = l_ref[...]
        inv_l = pl.reciprocal(l, approx=True)       # EUP slot
        inv_l = inv_l * (2.0 - l * inv_l)           # one Newton step -> ~f32 accuracy
        o_ref[0, 0] = (acc_ref[...] * inv_l).astype(o_ref.dtype)


def pallas_flash_attention(q, k, v, *, block_q=None, block_k=None):
    """q: (B, H, S, D); k, v: (B, n_kv_head, S, D) -> (B, H, S, D), causal."""
    B, H, S, D = q.shape
    Bk, Hkv, Sk, Dk = k.shape
    assert (B, S, D) == (Bk, Sk, Dk) and v.shape == k.shape
    assert H % Hkv == 0
    rep = H // Hkv

    bq = block_q if block_q is not None else _pick_tile_sublane(S, 256)
    bk = block_k if block_k is not None else _pick_tile_sublane(S, 256)
    assert S % bq == 0 and S % bk == 0

    scale = 1.0 / math.sqrt(D)

    def q_map(b, h, qi, ki):
        return (b, h, qi, 0)

    def kv_map(b, h, qi, ki):
        # GQA: query head h reads kv head h // rep (no jnp.repeat in HBM).
        # Causal clamp: blocks above the diagonal are never used -> re-point
        # them at the last useful block so no new DMA is issued for them.
        last_needed = ((qi + 1) * bq - 1) // bk
        return (b, h // rep, jnp.minimum(ki, last_needed), 0)

    def o_map(b, h, qi, ki):
        return (b, h, qi, 0)

    kernel = functools.partial(
        _flash_attn_kernel, scale=scale, block_q=bq, block_k=bk
    )

    return pl.pallas_call(
        kernel,
        out_shape=jax.ShapeDtypeStruct((B, H, S, D), q.dtype),
        grid=(B, H, S // bq, S // bk),
        in_specs=[
            pl.BlockSpec((1, 1, bq, D), q_map),
            pl.BlockSpec((1, 1, bk, D), kv_map),
            pl.BlockSpec((1, 1, bk, D), kv_map),
        ],
        out_specs=pl.BlockSpec((1, 1, bq, D), o_map),
        scratch_shapes=[
            pltpu.VMEM((bq, 1), jnp.float32),   # running max
            pltpu.VMEM((bq, 1), jnp.float32),   # running sum
            pltpu.VMEM((bq, D), jnp.float32),   # output accumulator
        ],
        compiler_params=pltpu.CompilerParams(
            dimension_semantics=("parallel", "parallel", "parallel", "arbitrary")
        ),
    )(q, k, v)


# ----------------------------------------------------------------------------
# Plain-JAX glue (rotary embedding, reshapes)
# ----------------------------------------------------------------------------
def apply_rotary_emb(x, freqs_cis):
    """x: (B, S, H, D), freqs_cis: (S, D//2, 2). Matches the PyTorch reference."""
    b, s, h, d = x.shape
    xshaped = x.astype(jnp.float32).reshape(b, s, h, d // 2, 2)
    fc = freqs_cis.reshape(1, s, 1, d // 2, 2)
    real = xshaped[..., 0] * fc[..., 0] - xshaped[..., 1] * fc[..., 1]
    imag = xshaped[..., 1] * fc[..., 0] + xshaped[..., 0] * fc[..., 1]
    out = jnp.stack([real, imag], axis=-1).reshape(b, s, h, d)
    return out.astype(x.dtype)


def precompute_freqs_cis(seq_len, head_dim, base=10000.0):
    freqs = 1.0 / (base ** (jnp.arange(0, head_dim, 2, dtype=jnp.float32) / head_dim))
    t = jnp.arange(seq_len, dtype=jnp.float32)
    angles = jnp.outer(t, freqs)  # (S, D//2)
    return jnp.stack([jnp.cos(angles), jnp.sin(angles)], axis=-1)  # (S, D//2, 2)


def attention_forward(x, wqkv, wo, freqs_cis, n_head, n_kv_head, head_dim,
                      *, attn_block_q=None, attn_block_k=None, lin_block_k=None):
    """Full Attention.forward (kv_cache=None, mask=None, eval mode)."""
    bsz, seqlen, dim = x.shape
    kv_size = n_kv_head * head_dim

    # ---- QKV projection (tiled Pallas matmul) ----
    qkv = pallas_linear(x.reshape(bsz * seqlen, dim), wqkv, block_k=lin_block_k)
    qkv = qkv.reshape(bsz, seqlen, dim + 2 * kv_size)
    xq = qkv[..., :dim].reshape(bsz, seqlen, n_head, head_dim)
    xk = qkv[..., dim:dim + kv_size].reshape(bsz, seqlen, n_kv_head, head_dim)
    xv = qkv[..., dim + kv_size:].reshape(bsz, seqlen, n_kv_head, head_dim)

    # ---- rotary embedding (elementwise glue; XLA fuses it with the transpose) ----
    # TODO(synk): fuse the interleaved rotary embedding into the attention-kernel
    # prologue (and drop the transposes) to save the extra Q/K HBM round trips.
    xq = apply_rotary_emb(xq, freqs_cis)
    xk = apply_rotary_emb(xk, freqs_cis)

    xq = jnp.transpose(xq, (0, 2, 1, 3))   # (B, H,   S, D)
    xk = jnp.transpose(xk, (0, 2, 1, 3))   # (B, Hkv, S, D)  -- no GQA repeat
    xv = jnp.transpose(xv, (0, 2, 1, 3))   # (B, Hkv, S, D)

    # ---- causal flash attention (Pallas) ----
    out = pallas_flash_attention(xq, xk, xv,
                                 block_q=attn_block_q, block_k=attn_block_k)

    out = jnp.transpose(out, (0, 2, 1, 3)).reshape(bsz, seqlen, dim)

    # ---- output projection (tiled Pallas matmul); resid dropout = identity ----
    out = pallas_linear(out.reshape(bsz * seqlen, dim), wo, block_k=lin_block_k)
    return out.reshape(bsz, seqlen, dim)


# ----------------------------------------------------------------------------
# Pure-JAX reference (for a correctness sanity check)
# ----------------------------------------------------------------------------
def reference_forward(x, wqkv, wo, freqs_cis, n_head, n_kv_head, head_dim):
    hp = jax.lax.Precision.HIGHEST
    bsz, seqlen, dim = x.shape
    kv_size = n_kv_head * head_dim
    qkv = jnp.matmul(x, wqkv, precision=hp)
    xq = qkv[..., :dim].reshape(bsz, seqlen, n_head, head_dim)
    xk = qkv[..., dim:dim + kv_size].reshape(bsz, seqlen, n_kv_head, head_dim)
    xv = qkv[..., dim + kv_size:].reshape(bsz, seqlen, n_kv_head, head_dim)
    xq = apply_rotary_emb(xq, freqs_cis)
    xk = apply_rotary_emb(xk, freqs_cis)
    xq, xk, xv = (jnp.transpose(t, (0, 2, 1, 3)) for t in (xq, xk, xv))
    rep = n_head // n_kv_head
    keys = jnp.repeat(xk, rep, axis=1)
    values = jnp.repeat(xv, rep, axis=1)
    scale = 1.0 / math.sqrt(head_dim)
    scores = jnp.einsum("bhqd,bhkd->bhqk", xq, keys, precision=hp) * scale
    mask = jnp.tril(jnp.ones((seqlen, seqlen), dtype=bool))
    scores = jnp.where(mask, scores, -jnp.inf)
    probs = jax.nn.softmax(scores, axis=-1)
    out = jnp.einsum("bhqk,bhkd->bhqd", probs, values, precision=hp)
    out = jnp.transpose(out, (0, 2, 1, 3)).reshape(bsz, seqlen, dim)
    return jnp.matmul(out, wo, precision=hp)


# ----------------------------------------------------------------------------
if __name__ == "__main__":
    # Small config that still exercises GQA, multi-block flash attention and
    # the K-accumulation loop of the tiled linear kernel:
    #   dim=256, n_head=4 (head_dim=64), n_kv_head=2, seq=16, batch=2
    bsz, seqlen, dim, n_head, n_kv_head = 2, 16, 256, 4, 2
    head_dim = dim // n_head                                   # 64
    total_kv_dim = (n_head + 2 * n_kv_head) * head_dim         # 512

    key = jax.random.PRNGKey(0)
    kx, kqkv, kwo = jax.random.split(key, 3)

    x = jax.random.normal(kx, (bsz, seqlen, dim), dtype=jnp.float32)
    # weights stored as (in_features, out_features), ~N(0, 0.02)
    wqkv = 0.02 * jax.random.normal(kqkv, (dim, total_kv_dim), dtype=jnp.float32)
    wo = 0.02 * jax.random.normal(kwo, (dim, dim), dtype=jnp.float32)

    freqs_cis = precompute_freqs_cis(seqlen, head_dim, base=10000.0)

    out = attention_forward(
        x, wqkv, wo, freqs_cis, n_head, n_kv_head, head_dim,
        attn_block_q=8, attn_block_k=8,   # small tiles: exercise online softmax + causal skip
        lin_block_k=128,                  # 2 K-blocks: exercise the accumulator loop
    )
    out = jax.block_until_ready(out)

    ref = reference_forward(x, wqkv, wo, freqs_cis, n_head, n_kv_head, head_dim)
    assert out.shape == (bsz, seqlen, dim)
    assert jnp.allclose(out, ref, atol=1e-3, rtol=1e-3), "mismatch vs reference"

    print("KERNEL_OK")
</pallas_src>

<mosaic_0001>
module attributes {stable_mosaic.version = 11 : i64} {
  func.func @_matmul_kernel(%arg0: i32, %arg1: i32, %arg2: i32, %arg3: memref<32x128xf32, #tpu.memory_space<vmem>>, %arg4: memref<128x256xf32, #tpu.memory_space<vmem>>, %arg5: memref<32x256xf32, #tpu.memory_space<vmem>>, %arg6: memref<32x256xf32, #tpu.memory_space<vmem>>) attributes {dimension_semantics = [#tpu.dimension_semantics<parallel>, #tpu.dimension_semantics<parallel>, #tpu.dimension_semantics<arbitrary>], iteration_bounds = array<i64: 1, 2, 2>, scalar_prefetch = 0 : i64, scratch_operands = 1 : i64, tpu.core_type = #tpu.core_type<tc>, window_params = [{transform_indices = @transform_0, window_bounds = array<i64: 32, 128>}, {transform_indices = @transform_1, window_bounds = array<i64: 128, 256>}, {transform_indices = @transform_2, window_bounds = array<i64: 32, 256>}]} {
    %c0_i32 = arith.constant 0 : i32
    %0 = arith.cmpi eq, %arg2, %c0_i32 : i32
    %1 = arith.extui %0 : i1 to i32
    %c0_i32_0 = arith.constant 0 : i32
    %2 = arith.cmpi ne, %1, %c0_i32_0 : i32
    scf.if %2 {
      %cst_9 = arith.constant 0.000000e+00 : f32
      %12 = vector.broadcast %cst_9 : f32 to vector<32x256xf32>
      %c0_10 = arith.constant 0 : index
      %c0_11 = arith.constant 0 : index
      %13 = vector.load %arg6[%c0_10, %c0_11] : memref<32x256xf32, #tpu.memory_space<vmem>>, vector<32x256xf32>
      tpu.vector_store %arg6[%c0_10, %c0_11], %12 {strides = array<i32>} : memref<32x256xf32, #tpu.memory_space<vmem>>, vector<32x256xf32>,
    } else {
    }
    %c0 = arith.constant 0 : index
    %c0_1 = arith.constant 0 : index
    %3 = vector.load %arg6[%c0, %c0_1] : memref<32x256xf32, #tpu.memory_space<vmem>>, vector<32x256xf32>
    %c0_2 = arith.constant 0 : index
    %c0_3 = arith.constant 0 : index
    %4 = vector.load %arg3[%c0_2, %c0_3] : memref<32x128xf32, #tpu.memory_space<vmem>>, vector<32x128xf32>
    %c0_4 = arith.constant 0 : index
    %c0_5 = arith.constant 0 : index
    %5 = vector.load %arg4[%c0_4, %c0_5] : memref<128x256xf32, #tpu.memory_space<vmem>>, vector<128x256xf32>
    %cst = arith.constant dense<0.000000e+00> : vector<32x256xf32>
    %6 = tpu.matmul %4, %5, %cst {dimension_numbers = #tpu.dot_dimension_numbers<[1], [0], [0], [1], [0, 0, 1, 1], [], []>} : vector<32x128xf32>, vector<128x256xf32>, vector<32x256xf32> -> vector<32x256xf32>
    %7 = arith.addf %3, %6 : vector<32x256xf32>
    %c0_6 = arith.constant 0 : index
    %c0_7 = arith.constant 0 : index
    %8 = vector.load %arg6[%c0_6, %c0_7] : memref<32x256xf32, #tpu.memory_space<vmem>>, vector<32x256xf32>
    tpu.vector_store %arg6[%c0_6, %c0_7], %7 {strides = array<i32>} : memref<32x256xf32, #tpu.memory_space<vmem>>, vector<32x256xf32>,
    %c1_i32 = arith.constant 1 : i32
    %9 = arith.cmpi eq, %arg2, %c1_i32 : i32
    %10 = arith.extui %9 : i1 to i32
    %c0_i32_8 = arith.constant 0 : i32
    %11 = arith.cmpi ne, %10, %c0_i32_8 : i32
    scf.if %11 {
      %c0_9 = arith.constant 0 : index
      %c0_10 = arith.constant 0 : index
      %12 = vector.load %arg6[%c0_9, %c0_10] : memref<32x256xf32, #tpu.memory_space<vmem>>, vector<32x256xf32>
      %c0_11 = arith.constant 0 : index
      %c0_12 = arith.constant 0 : index
      %13 = vector.load %arg5[%c0_11, %c0_12] : memref<32x256xf32, #tpu.memory_space<vmem>>, vector<32x256xf32>
      tpu.vector_store %arg5[%c0_11, %c0_12], %12 {strides = array<i32>} : memref<32x256xf32, #tpu.memory_space<vmem>>, vector<32x256xf32>,
    } else {
    }
    return
  }
  func.func @transform_0(%arg0: i32, %arg1: i32, %arg2: i32) -> (i32, i32) {
    %c0_i32 = arith.constant 0 : i32
    return %arg0, %arg2 : i32, i32
  }
  func.func @transform_1(%arg0: i32, %arg1: i32, %arg2: i32) -> (i32, i32) {
    %c0_i32 = arith.constant 0 : i32
    return %arg2, %arg1 : i32, i32
  }
  func.func @transform_2(%arg0: i32, %arg1: i32, %arg2: i32) -> (i32, i32) {
    %c0_i32 = arith.constant 0 : i32
    return %arg0, %arg1 : i32, i32
  }
}

</mosaic_0001>

<llo_original>
// kernel: tpu_custom_call.1
$region0: #{tpu_custom_call.1}
  #allocation0 [shape = 'u32[]', space=smem, size = 0x4, offset = 0x4, fixed_abs, tag = 'smem constant byte address 0x4 - core index']
  #allocation1 [shape = 'u32[144,128]{1,0:T(1,128)}', space=vmem, size = 0x12000, scoped, tag = 'internal scratch']
  #allocation2 [shape = 'f32[32,256]{1,0:T(8,128)}', space=vmem, size = 0x8000, scoped, tag = 'scratch operand']
  %s0 = inlined_call_operand.hbm [shape: f32[32,256], index: 0, kind: input, shape index: {}]
  %s1 = inlined_call_operand.hbm [shape: f32[256,512], index: 1, kind: input, shape index: {}]
  %s2 = inlined_call_operand.hbm [shape: f32[32,512], index: 2, kind: output, shape index: {}]
  %s3 = sld [smem:[#allocation0]]
  $region57: #{tpu_custom_call.1} parent=0
    _
  %s5 = ssub.s32 1, %s3
  %s6 = scalar_select 0, %s5, %s3
  $region1: #{tpu_custom_call.1} parent=0
    #allocation3 [shape = 'u8[32768]{0}', space=vmem, size = 0x8000, scoped, tag = 'input window, operand 0']
    #allocation4 [shape = 's32[2]{0}', space=sflag, size = 0x8, scoped, tag = 'scoped memory for tpu_custom_call.1']
    #allocation5 [shape = 's32[2]{0}', space=sflag, size = 0x8, scoped, tag = 'scoped memory for tpu_custom_call.1']
    #allocation6 [shape = 'u8[262144]{0}', space=vmem, size = 0x40000, scoped, tag = 'input window, operand 1']
    #allocation7 [shape = 's32[2]{0}', space=sflag, size = 0x8, scoped, tag = 'scoped memory for tpu_custom_call.1']
    #allocation8 [shape = 'u8[65536]{0}', space=vmem, size = 0x10000, scoped, tag = 'output window, operand 0']
    %7 = vsyncpa [#allocation4], 0
    %s8 = scalar_lea.sflag [#allocation4], 1
    %9 = vsyncpa %s8, 0
    %10 = vsyncpa [#allocation7], 0
    %s11 = scalar_lea.sflag [#allocation7], 1
    %12 = vsyncpa %s11, 0
    %13 = vsyncpa [#allocation5], 0
    %s14 = scalar_lea.sflag [#allocation5], 1
    %15 = vsyncpa %s14, 0
    loop: start=0, step=1, limit=6
    $region2: #{tpu_custom_call.1} parent=1 // loop_pre_header
      _
    $region3: #{tpu_custom_call.1} parent=1 // loop_header
      %s17 = sphi 0, %s21
      %p18 = scmp.ge.s32.totalorder %s17, 6
      %s24 = sphi 0, %s43
      %s25 = sphi 0, %s39
      %s26 = sphi 0, %s35
      %s27 = sphi 0, %s24
      %s28 = sphi 0, %s25
      %s29 = sphi 0, %s26
      %s30 = sphi 0, %s27
      %s31 = sphi 0, %s28
      %s32 = sphi 0, %s29
      %s48 = sphi 0, %s50
      %s51 = sphi 0, %s48
      %s52 = sphi 0, %s51
      %s68 = sphi 0, %s52
      %s76 = sphi 0, %s78
      %s79 = sphi 0, %s76
      %s80 = sphi 0, %s79
      %s96 = sphi 0, %s80
      %s104 = sphi 0, %s106
      %s107 = sphi 0, %s104
      %s108 = sphi 0, %s107
      %s124 = sphi 0, %s108
    $region4: #{tpu_custom_call.1} parent=1 // loop_header_branch
      %20 = sbr.rel (%p18) target = $region8
    $region5: #{tpu_custom_call.1} parent=1 // loop_body
      %s22 = ssub.s32 %s17, 1
      %s23 = ssub.s32 %s17, 2
      %s33 = sadd.s32 1, %s26
      %p34 = scmp.ge.s32.totalorder %s33, 2
      %s35 = scalar_select %p34, 0, %s33
      %s36 = sadd.s32 1, %s25
      %s37 = scalar_select %p34, %s36, %s25
      %p38 = scmp.ge.s32.totalorder %s37, 2
      %s39 = scalar_select %p38, 0, %s37
      %s40 = sadd.s32 1, %s24
      %s41 = scalar_select %p38, %s40, %s24
      %p42 = scmp.ge.s32.totalorder %s41, 1
      %s43 = scalar_select %p42, 0, %s41
      %s44 = ssub.s32 %s24, %s43
      %s45 = ssub.s32 %s26, %s35
      %s46 = sor.u32 %s44, %s45
      %p47 = scmp.eq.s32.totalorder %s46, 0
      %s49 = sadd.s32 %s48, 1
      %s50 = scalar_select %p47, %s48, %s49
      %p53 = pneg %p47
      %p54 = scmp.eq.s32.totalorder %s17, 3
      %p55 = por %p53, %p54
      %p56 = scmp.ne.s32.totalorder %s48, %s51
      %p57 = scmp.eq.s32.totalorder %s17, 0
      %p58 = por %p56, %p57
      %p59 = scmp.ne.s32.totalorder %s48, %s51
      %p60 = scmp.eq.s32.totalorder %s22, 3
      %p61 = por %p59, %p60
      %p62 = scmp.ne.s32.totalorder %s51, %s52
      %p63 = scmp.eq.s32.totalorder %s22, 0
      %p64 = por %p62, %p63
      %p65 = scmp.ne.s32.totalorder %s51, %s52
      %p66 = scmp.eq.s32.totalorder %s23, 3
      %p67 = por %p65, %p66
      %p69 = scmp.ne.s32.totalorder %s52, %s68
      %p70 = scmp.eq.s32.totalorder %s23, 0
      %p71 = por %p69, %p70
      %s72 = ssub.s32 %s26, %s35
      %s73 = ssub.s32 %s25, %s39
      %s74 = sor.u32 %s72, %s73
      %p75 = scmp.eq.s32.totalorder %s74, 0
      %s77 = sadd.s32 %s76, 1
      %s78 = scalar_select %p75, %s76, %s77
      %p81 = pneg %p75
      %p82 = scmp.eq.s32.totalorder %s17, 3
      %p83 = por %p81, %p82
      %p84 = scmp.ne.s32.totalorder %s76, %s79
      %p85 = scmp.eq.s32.totalorder %s17, 0
      %p86 = por %p84, %p85
      %p87 = scmp.ne.s32.totalorder %s76, %s79
      %p88 = scmp.eq.s32.totalorder %s22, 3
      %p89 = por %p87, %p88
      %p90 = scmp.ne.s32.totalorder %s79, %s80
      %p91 = scmp.eq.s32.totalorder %s22, 0
      %p92 = por %p90, %p91
      %p93 = scmp.ne.s32.totalorder %s79, %s80
      %p94 = scmp.eq.s32.totalorder %s23, 3
      %p95 = por %p93, %p94
      %p97 = scmp.ne.s32.totalorder %s80, %s96
      %p98 = scmp.eq.s32.totalorder %s23, 0
      %p99 = por %p97, %p98
      %s100 = ssub.s32 %s24, %s43
      %s101 = ssub.s32 %s25, %s39
      %s102 = sor.u32 %s100, %s101
      %p103 = scmp.eq.s32.totalorder %s102, 0
      %s105 = sadd.s32 %s104, 1
      %s106 = scalar_select %p103, %s104, %s105
      %p109 = pneg %p103
      %p110 = scmp.eq.s32.totalorder %s17, 3
      %p111 = por %p109, %p110
      %p112 = scmp.ne.s32.totalorder %s104, %s107
      %p113 = scmp.eq.s32.totalorder %s17, 0
      %p114 = por %p112, %p113
      %p115 = scmp.ne.s32.totalorder %s104, %s107
      %p116 = scmp.eq.s32.totalorder %s22, 3
      %p117 = por %p115, %p116
      %p118 = scmp.ne.s32.totalorder %s107, %s108
      %p119 = scmp.eq.s32.totalorder %s22, 0
      %p120 = por %p118, %p119
      %p121 = scmp.ne.s32.totalorder %s107, %s108
      %p122 = scmp.eq.s32.totalorder %s23, 3
      %p123 = por %p121, %p122
      %p125 = scmp.ne.s32.totalorder %s108, %s124
      %p126 = scmp.eq.s32.totalorder %s23, 0
      %p127 = por %p125, %p126
      %p128 = scmp.le.s32.totalorder 1, %s17
      %p129 = scmp.lt.s32.totalorder %s17, 5
      %p130 = pnand %p128, %p129
      %p131 = pneg %p130
      // Predicated region
      $region9: #{tpu_custom_call.1} parent=5 // pred_check
        _
      $region10: #{tpu_custom_call.1} parent=5 // pred_check_branch
        %133 = sbr.rel (%p130) target = $region12
      $region11: #{tpu_custom_call.1} parent=5 // pred_region
        %s134 = ssub.s32 %s17, 1
      $region12: #{tpu_custom_call.1} parent=5 // pred_fallthru
        _
      %p135 = scmp.lt.s32.totalorder %s17, 4
      // Predicated region
      $region13: #{tpu_custom_call.1} parent=5 // pred_check
        %p136 = pneg %p135
      $region14: #{tpu_custom_call.1} parent=5 // pred_check_branch
        %138 = sbr.rel (%p136) target = $region16
      $region15: #{tpu_custom_call.1} parent=5 // pred_region
        // Predicated region
        $region17: #{tpu_custom_call.1} parent=15 // pred_check
          %p139 = pneg %p58
        $region18: #{tpu_custom_call.1} parent=15 // pred_check_branch
          %141 = sbr.rel (%p139) target = $region20
        $region19: #{tpu_custom_call.1} parent=15 // pred_region
          %s142 = sand.u32 %s48, 1
          %s143 = scalar_lea.sflag [#allocation4], %s142
          %s144 = sand.u32 %s48, 1
          %s145 = smul.addr %s144, 32
          %s146 = scalar_lea.vmem [#allocation3], %s145
          %s147 = smul.u32 4, %s24
          %s149 = ssub.s32 512, 512
          %150 = vsyncadd %s143, %s149
          %s151 = smul.addr %s147, 2
          %s152 = sadd.s32 %s26, %s151
          %s153 = smul.addr %s152, 128
          %s154 = scalar_lea.hbm %s0, %s153
          %s155 = sshll.u32 %s146, 4
          %s156 = int_to_ptr.vmem [resolvable:$true] %s155
          %161 = dma.hbm_to_vmem [thread:$0]  %s154, 512, %s156, %s143, 256, 128, 8
        $region20: #{tpu_custom_call.1} parent=15 // pred_fallthru
          _
        // Predicated region
        $region21: #{tpu_custom_call.1} parent=15 // pred_check
          %p162 = pneg %p86
        $region22: #{tpu_custom_call.1} parent=15 // pred_check_branch
          %164 = sbr.rel (%p162) target = $region24
        $region23: #{tpu_custom_call.1} parent=15 // pred_region
          %s165 = sand.u32 %s76, 1
          %s166 = scalar_lea.sflag [#allocation7], %s165
          %s167 = sand.u32 %s76, 1
          %s168 = smul.addr %s167, 256
          %s169 = scalar_lea.vmem [#allocation6], %s168
          %s170 = smul.u32 16, %s26
          %s171 = smul.u32 2, %s25
          %s173 = ssub.s32 4096, 4096
          %174 = vsyncadd %s166, %s173
          %s175 = smul.addr %s170, 4
          %s176 = sadd.s32 %s171, %s175
          %s177 = smul.addr %s176, 128
          %s178 = scalar_lea.hbm %s1, %s177
          %s179 = sshll.u32 %s169, 4
          %s180 = int_to_ptr.vmem [resolvable:$true] %s179
          %185 = dma.hbm_to_vmem [thread:$0]  %s178, 4096, %s180, %s166, 512, 256, 16
        $region24: #{tpu_custom_call.1} parent=15 // pred_fallthru
          _
      $region16: #{tpu_custom_call.1} parent=5 // pred_fallthru
        _
      %p186 = scmp.le.s32.totalorder 1, %s17
      %p187 = scmp.lt.s32.totalorder %s17, 5
      %p188 = pnand %p186, %p187
      %p189 = pneg %p188
      // Predicated region
      $region25: #{tpu_custom_call.1} parent=5 // pred_check
        _
      $region26: #{tpu_custom_call.1} parent=5 // pred_check_branch
        %191 = sbr.rel (%p188) target = $region28
      $region27: #{tpu_custom_call.1} parent=5 // pred_region
        %s192 = ssub.s32 %s17, 1
        %s193 = sand.u32 %s51, 1
        %s194 = scalar_lea.sflag [#allocation4], %s193
        %s195 = sand.u32 %s51, 1
        %s196 = smul.addr %s195, 32
        %s197 = scalar_lea.vmem [#allocation3], %s196
        // Predicated region
        $region29: #{tpu_custom_call.1} parent=27 // pred_check
          %p198 = pneg %p64
        $region30: #{tpu_custom_call.1} parent=27 // pred_check_branch
          %200 = sbr.rel (%p198) target = $region32
        $region31: #{tpu_custom_call.1} parent=27 // pred_region
          %201 = dma.done %s194, 512
        $region32: #{tpu_custom_call.1} parent=27 // pred_fallthru
          _
        %s202 = sand.u32 %s79, 1
        %s203 = scalar_lea.sflag [#allocation7], %s202
        %s204 = sand.u32 %s79, 1
        %s205 = smul.addr %s204, 256
        %s206 = scalar_lea.vmem [#allocation6], %s205
        // Predicated region
        $region33: #{tpu_custom_call.1} parent=27 // pred_check
          %p207 = pneg %p92
        $region34: #{tpu_custom_call.1} parent=27 // pred_check_branch
          %209 = sbr.rel (%p207) target = $region36
        $region35: #{tpu_custom_call.1} parent=27 // pred_region
          %210 = dma.done %s203, 4096
        $region36: #{tpu_custom_call.1} parent=27 // pred_fallthru
          _
        %s211 = sand.u32 %s51, 1
        %s212 = scalar_lea.sflag [#allocation4], %s211
        %s213 = sand.u32 %s51, 1
        %s214 = smul.addr %s213, 32
        %s215 = scalar_lea.vmem [#allocation3], %s214
        %p216 = pneg %p64
        %p217 = pneg %p61
        %s218 = sand.u32 %s79, 1
        %s219 = scalar_lea.sflag [#allocation7], %s218
        %s220 = sand.u32 %s79, 1
        %s221 = smul.addr %s220, 256
        %s222 = scalar_lea.vmem [#allocation6], %s221
        %p223 = pneg %p92
        %p224 = pneg %p89
        %p225 = pneg %p120
        %p226 = pneg %p117
        %s227 = sand.u32 %s107, 1
        %s228 = scalar_lea.sflag [#allocation5], %s227
        %s229 = sand.u32 %s107, 1
        %s230 = smul.addr %s229, 64
        %s231 = scalar_lea.vmem [#allocation8], %s230
        %s232 = smul.u32 4, %s27
        %s233 = smul.u32 16, %s29
        %s234 = smul.u32 2, %s28
        %s235 = smul.u32 4, %s27
        %s236 = smul.u32 2, %s28
        %p237 = scmp.eq.s32.totalorder %s29, 0
        // Predicated region
        $region37: #{tpu_custom_call.1} parent=27 // pred_check
          %p238 = pneg %p237
        $region38: #{tpu_custom_call.1} parent=27 // pred_check_branch
          %240 = sbr.rel (%p238) target = $region40
        $region39: #{tpu_custom_call.1} parent=27 // pred_region
          %241 = vst [vmem:[#allocation2] sm:$0xff] 0.0
          %242 = vst [vmem:[#allocation2 + $0x8] sm:$0xff] 0.0
          %243 = vst [vmem:[#allocation2 + $0x10] sm:$0xff] 0.0
          %244 = vst [vmem:[#allocation2 + $0x18] sm:$0xff] 0.0
          %245 = vst [vmem:[#allocation2 + $0x20] sm:$0xff] 0.0
          %246 = vst [vmem:[#allocation2 + $0x28] sm:$0xff] 0.0
          %247 = vst [vmem:[#allocation2 + $0x30] sm:$0xff] 0.0
          %248 = vst [vmem:[#allocation2 + $0x38] sm:$0xff] 0.0
        $region40: #{tpu_custom_call.1} parent=27 // pred_fallthru
          _
        %v249 = vld [vmem:[#allocation2] sm:$0xff]
        %v250 = vld [vmem:[#allocation2 + $0x8] sm:$0xff]
        %v251 = vld [vmem:[#allocation2 + $0x10] sm:$0xff]
        %v252 = vld [vmem:[#allocation2 + $0x18] sm:$0xff]
        %v253 = vld [vmem:[#allocation2 + $0x20] sm:$0xff]
        %v254 = vld [vmem:[#allocation2 + $0x28] sm:$0xff]
        %v255 = vld [vmem:[#allocation2 + $0x30] sm:$0xff]
        %v256 = vld [vmem:[#allocation2 + $0x38] sm:$0xff]
        %v257 = vld [vmem:[%s197] sm:$0xff]
        %v258 = vld [vmem:[%s197 + $0x8] sm:$0xff]
        %v259 = vld [vmem:[%s197 + $0x10] sm:$0xff]
        %v260 = vld [vmem:[%s197 + $0x18] sm:$0xff]
        %v261 = vld [vmem:[%s206] sm:$0xff]
        %v262 = vld [vmem:[%s206 + $0x8] sm:$0xff]
        %v263 = vld [vmem:[%s206 + $0x10] sm:$0xff]
        %v264 = vld [vmem:[%s206 + $0x18] sm:$0xff]
        %v265 = vld [vmem:[%s206 + $0x20] sm:$0xff]
        %v266 = vld [vmem:[%s206 + $0x28] sm:$0xff]
        %v267 = vld [vmem:[%s206 + $0x30] sm:$0xff]
        %v268 = vld [vmem:[%s206 + $0x38] sm:$0xff]
        %v269 = vld [vmem:[%s206 + $0x40] sm:$0xff]
        %v270 = vld [vmem:[%s206 + $0x48] sm:$0xff]
        %v271 = vld [vmem:[%s206 + $0x50] sm:$0xff]
        %v272 = vld [vmem:[%s206 + $0x58] sm:$0xff]
        %v273 = vld [vmem:[%s206 + $0x60] sm:$0xff]
        %v274 = vld [vmem:[%s206 + $0x68] sm:$0xff]
        %v275 = vld [vmem:[%s206 + $0x70] sm:$0xff]
        %v276 = vld [vmem:[%s206 + $0x78] sm:$0xff]
        %v277 = vld [vmem:[%s206 + $0x80] sm:$0xff]
        %v278 = vld [vmem:[%s206 + $0x88] sm:$0xff]
        %v279 = vld [vmem:[%s206 + $0x90] sm:$0xff]
        %v280 = vld [vmem:[%s206 + $0x98] sm:$0xff]
        %v281 = vld [vmem:[%s206 + $0xa0] sm:$0xff]
        %v282 = vld [vmem:[%s206 + $0xa8] sm:$0xff]
        %v283 = vld [vmem:[%s206 + $0xb0] sm:$0xff]
        %v284 = vld [vmem:[%s206 + $0xb8] sm:$0xff]
        %v285 = vld [vmem:[%s206 + $0xc0] sm:$0xff]
        %v286 = vld [vmem:[%s206 + $0xc8] sm:$0xff]
        %v287 = vld [vmem:[%s206 + $0xd0] sm:$0xff]
        %v288 = vld [vmem:[%s206 + $0xd8] sm:$0xff]
        %v289 = vld [vmem:[%s206 + $0xe0] sm:$0xff]
        %v290 = vld [vmem:[%s206 + $0xe8] sm:$0xff]
        %v291 = vld [vmem:[%s206 + $0xf0] sm:$0xff]
        %v292 = vld [vmem:[%s206 + $0xf8] sm:$0xff]
        %293 = vmatprep.subr.mxu0 %v262
        %294 = vmatpush1.msra.mxu0 %v261
        %295 = vmatprep.subr.mxu0 %v264
        %296 = vmatpush1.msra.mxu0 %v263
        %297 = vmatprep.subr.mxu0 %v266
        %298 = vmatpush1.msra.mxu0 %v265
        %299 = vmatprep.subr.mxu0 %v268
        %300 = vmatpush1.msra.mxu0 %v267
        %301 = vmatprep.subr.mxu0 %v270
        %302 = vmatpush1.msra.mxu0 %v269
        %303 = vmatprep.subr.mxu0 %v272
        %304 = vmatpush1.msra.mxu0 %v271
        %305 = vmatprep.subr.mxu0 %v274
        %306 = vmatpush1.msra.mxu0 %v273
        %307 = vmatprep.subr.mxu0 %v276
        %308 = vmatpush1.msra.mxu0 %v275
        %309 = vmatprep.subr.mxu0 %v278
        %310 = vmatpush1.msra.mxu0 %v277
        %311 = vmatprep.subr.mxu0 %v280
        %312 = vmatpush1.msra.mxu0 %v279
        %313 = vmatprep.subr.mxu0 %v282
        %314 = vmatpush1.msra.mxu0 %v281
        %315 = vmatprep.subr.mxu0 %v284
        %316 = vmatpush1.msra.mxu0 %v283
        %317 = vmatprep.subr.mxu0 %v286
        %318 = vmatpush1.msra.mxu0 %v285
        %319 = vmatprep.subr.mxu0 %v288
        %320 = vmatpush1.msra.mxu0 %v287
        %321 = vmatprep.subr.mxu0 %v290
        %322 = vmatpush1.msra.mxu0 %v289
        %323 = vmatprep.subr.mxu0 %v292
        %324 = vmatpush1.msra.mxu0 %v291
        %325 = vmatprep.subr.mxu0 0.0
        %326 = vmatpush1.msra.mxu0 0.0
        %327 = vmatprep.subr.mxu0 0.0
        %328 = vmatpush1.msra.mxu0 0.0
        %329 = vmatprep.subr.mxu0 0.0
        %330 = vmatpush1.msra.mxu0 0.0
        %331 = vmatprep.subr.mxu0 0.0
        %332 = vmatpush1.msra.mxu0 0.0
        %333 = vmatprep.subr.mxu0 0.0
        %334 = vmatpush1.msra.mxu0 0.0
        %335 = vmatprep.subr.mxu0 0.0
        %336 = vmatpush1.msra.mxu0 0.0
        %337 = vmatprep.subr.mxu0 0.0
        %338 = vmatpush1.msra.mxu0 0.0
        %339 = vmatprep.subr.mxu0 0.0
        %340 = vmatpush1.msra.mxu0 0.0
        %341 = vmatprep.subr.mxu0 0.0
        %342 = vmatpush1.msra.mxu0 0.0
        %343 = vmatprep.subr.mxu0 0.0
        %344 = vmatpush1.msra.mxu0 0.0
        %345 = vmatprep.subr.mxu0 0.0
        %346 = vmatpush1.msra.mxu0 0.0
        %347 = vmatprep.subr.mxu0 0.0
        %348 = vmatpush1.msra.mxu0 0.0
        %349 = vmatprep.subr.mxu0 0.0
        %350 = vmatpush1.msra.mxu0 0.0
        %351 = vmatprep.subr.mxu0 0.0
        %352 = vmatpush1.msra.mxu0 0.0
        %353 = vmatprep.subr.mxu0 0.0
        %354 = vmatpush1.msra.mxu0 0.0
        %355 = vmatprep.subr.mxu0 0.0
        %356 = vmatpush1.msra.mxu0 0.0
        %357 = vmatprep.mubr.f32.mxu0 0.0
        %358 = vmatmul.mubr.f32.gmra.mrb[0].mxu0 %v257
        %v359 = vpop.f32.mrb[0].mxu0
        %v360 = vadd.f32 0.0, %v359
        %v361 = vpop.f32.mrb[0].mxu0
        %v362 = vadd.f32 0.0, %v361
        %363 = vmatprep.mubr.f32.mxu0 0.0
        %364 = vmatmul.mubr.f32.gmra.mrb[0].mxu0 %v258
        %v365 = vpop.f32.mrb[0].mxu0
        %v366 = vadd.f32 0.0, %v365
        %v367 = vpop.f32.mrb[0].mxu0
        %v368 = vadd.f32 0.0, %v367
        %369 = vmatprep.mubr.f32.mxu0 0.0
        %370 = vmatmul.mubr.f32.gmra.mrb[0].mxu0 %v259
        %v371 = vpop.f32.mrb[0].mxu0
        %v372 = vadd.f32 0.0, %v371
        %v373 = vpop.f32.mrb[0].mxu0
        %v374 = vadd.f32 0.0, %v373
        %375 = vmatprep.mubr.f32.mxu0 0.0
        %376 = vmatmul.mubr.f32.gmra.mrb[0].mxu0 %v260
        %v377 = vpop.f32.mrb[0].mxu0
        %v378 = vadd.f32 0.0, %v377
        %v379 = vpop.f32.mrb[0].mxu0
        %v380 = vadd.f32 0.0, %v379
        %381 = vdwg.mxu0
        %v382 = vadd.f32 %v249, %v360
        %v383 = vadd.f32 %v250, %v362
        %v384 = vadd.f32 %v251, %v366
        %v385 = vadd.f32 %v252, %v368
        %v386 = vadd.f32 %v253, %v372
        %v387 = vadd.f32 %v254, %v374
        %v388 = vadd.f32 %v255, %v378
        %v389 = vadd.f32 %v256, %v380
        %390 = vst [vmem:[#allocation2] sm:$0xff] %v382
        %391 = vst [vmem:[#allocation2 + $0x8] sm:$0xff] %v383
        %392 = vst [vmem:[#allocation2 + $0x10] sm:$0xff] %v384
        %393 = vst [vmem:[#allocation2 + $0x18] sm:$0xff] %v385
        %394 = vst [vmem:[#allocation2 + $0x20] sm:$0xff] %v386
        %395 = vst [vmem:[#allocation2 + $0x28] sm:$0xff] %v387
        %396 = vst [vmem:[#allocation2 + $0x30] sm:$0xff] %v388
        %397 = vst [vmem:[#allocation2 + $0x38] sm:$0xff] %v389
        %p398 = scmp.eq.s32.totalorder %s29, 1
        // Predicated region
        $region41: #{tpu_custom_call.1} parent=27 // pred_check
          %p399 = pneg %p398
        $region42: #{tpu_custom_call.1} parent=27 // pred_check_branch
          %401 = sbr.rel (%p399) target = $region44
        $region43: #{tpu_custom_call.1} parent=27 // pred_region
          %v402 = vld [vmem:[#allocation2] sm:$0xff]
          %v403 = vld [vmem:[#allocation2 + $0x8] sm:$0xff]
          %v404 = vld [vmem:[#allocation2 + $0x10] sm:$0xff]
          %v405 = vld [vmem:[#allocation2 + $0x18] sm:$0xff]
          %v406 = vld [vmem:[#allocation2 + $0x20] sm:$0xff]
          %v407 = vld [vmem:[#allocation2 + $0x28] sm:$0xff]
          %v408 = vld [vmem:[#allocation2 + $0x30] sm:$0xff]
          %v409 = vld [vmem:[#allocation2 + $0x38] sm:$0xff]
          %410 = vst [vmem:[%s231] sm:$0xff] %v402
          %411 = vst [vmem:[%s231 + $0x8] sm:$0xff] %v403
          %412 = vst [vmem:[%s231 + $0x10] sm:$0xff] %v404
          %413 = vst [vmem:[%s231 + $0x18] sm:$0xff] %v405
          %414 = vst [vmem:[%s231 + $0x20] sm:$0xff] %v406
          %415 = vst [vmem:[%s231 + $0x28] sm:$0xff] %v407
          %416 = vst [vmem:[%s231 + $0x30] sm:$0xff] %v408
          %417 = vst [vmem:[%s231 + $0x38] sm:$0xff] %v409
        $region44: #{tpu_custom_call.1} parent=27 // pred_fallthru
          _
        %s418 = sand.u32 %s107, 1
        %s419 = scalar_lea.sflag [#allocation5], %s418
        %s420 = sand.u32 %s107, 1
        %s421 = smul.addr %s420, 64
        %s422 = scalar_lea.vmem [#allocation8], %s421
        // Predicated region
        $region45: #{tpu_custom_call.1} parent=27 // pred_check
          %p423 = pneg %p117
        $region46: #{tpu_custom_call.1} parent=27 // pred_check_branch
          %425 = sbr.rel (%p423) target = $region48
        $region47: #{tpu_custom_call.1} parent=27 // pred_region
          %s426 = smul.u32 4, %s27
          %s427 = smul.u32 2, %s28
          %s429 = ssub.s32 1024, 1024
          %430 = vsyncadd %s419, %s429
          %s431 = smul.addr %s426, 4
          %s432 = sadd.s32 %s427, %s431
          %s433 = smul.addr %s432, 128
          %s434 = scalar_lea.hbm %s2, %s433
          %s435 = sshll.u32 %s422, 4
          %s436 = int_to_ptr.vmem [resolvable:$true] %s435
          %441 = dma.vmem_to_hbm [thread:$0]  %s436, 1024, %s434, %s419, 256, 512, 16
        $region48: #{tpu_custom_call.1} parent=27 // pred_fallthru
          _
      $region28: #{tpu_custom_call.1} parent=5 // pred_fallthru
        _
      %p442 = scmp.le.s32.totalorder 2, %s17
      // Predicated region
      $region49: #{tpu_custom_call.1} parent=5 // pred_check
        %p443 = pneg %p442
      $region50: #{tpu_custom_call.1} parent=5 // pred_check_branch
        %445 = sbr.rel (%p443) target = $region52
      $region51: #{tpu_custom_call.1} parent=5 // pred_region
        %s446 = ssub.s32 %s17, 2
        // Predicated region
        $region53: #{tpu_custom_call.1} parent=51 // pred_check
          %p447 = pneg %p123
        $region54: #{tpu_custom_call.1} parent=51 // pred_check_branch
          %449 = sbr.rel (%p447) target = $region56
        $region55: #{tpu_custom_call.1} parent=51 // pred_region
          %s450 = sand.u32 %s108, 1
          %s451 = scalar_lea.sflag [#allocation5], %s450
          %s452 = sand.u32 %s108, 1
          %s453 = smul.addr %s452, 64
          %s454 = scalar_lea.vmem [#allocation8], %s453
          %455 = dma.done %s451, 1024
        $region56: #{tpu_custom_call.1} parent=51 // pred_fallthru
          _
      $region52: #{tpu_custom_call.1} parent=5 // pred_fallthru
        _
    $region6: #{tpu_custom_call.1} parent=1 // loop_footer
      %s21 = sadd.s32 1, %s17
    $region7: #{tpu_custom_call.1} parent=1 // loop_footer_branch
      %16 = sbr.rel target = $region3
    $region8: #{tpu_custom_call.1} parent=1 // loop_exit
      _
    %456 = vsyncpa [#allocation4], 1
    %s457 = scalar_lea.sflag [#allocation4], 1
    %458 = vsyncpa %s457, 1
    %459 = vsyncpa [#allocation7], 1
    %s460 = scalar_lea.sflag [#allocation7], 1
    %461 = vsyncpa %s460, 1
    %462 = vsyncpa [#allocation5], 1
    %s463 = scalar_lea.sflag [#allocation5], 1
    %464 = vsyncpa %s463, 1

</llo_original>
